<compile_context>
chip_gen: v7x
topology: tpu7x:2x2x1
jax: 0.10.0
libtpu: 0.0.40
codegen_flags: <defaults>
</compile_context>

<pallas_src>
import math

import jax
import jax.numpy as jnp
import numpy as np
from jax.experimental import pallas as pl
from jax.experimental.pallas import tpu as pltpu


# ----------------------------------------------------------------------------
# Kernel
# ----------------------------------------------------------------------------
def _chain_crf_energy_kernel(x_ref, w_ref, b_ref, mask_ref, out_ref):
    """energy = (x @ W_sum + b_sum) * mask for one tile of rows.

    x_ref    : [tm, D]     token features (input dtype: f32 or bf16)
    w_ref    : [D, L*L]    fused (trans + lane-expanded state) weights (resident)
    b_ref    : [1, L*L]    fused bias, f32 (resident)
    mask_ref : [tm, 1]     per-token mask, f32
    out_ref  : [tm, L*L]   flat energy tile
    """
    e = jnp.dot(x_ref[...], w_ref[...], preferred_element_type=jnp.float32)
    e = (e + b_ref[...]) * mask_ref[...]
    out_ref[...] = e.astype(out_ref.dtype)


# ----------------------------------------------------------------------------
# Parameter glue (hoist this to model init; it is pure setup, no per-token work)
# ----------------------------------------------------------------------------
def fuse_chain_crf_params(ws, bs, wt, bt, *, param_dtype=jnp.float32):
    """Fold state_nn and trans_nn into a single [D, L*L] weight + [1, L*L] bias.

    ws : [L, D]    state_nn.weight  (PyTorch layout [out, in]), L = num_labels+1
    bs : [L]       state_nn.bias
    wt : [L*L, D]  trans_nn.weight
    bt : [L*L]     trans_nn.bias

    (x @ Wt.T + bt) + broadcast(x @ Ws.T + bs over the prev-label axis)
        == x @ (Wt.T + tile(Ws.T, L)) + (bt + tile(bs, L))
    because flat column c = i*L + j carries "next label" j = c % L.
    """
    L, _ = ws.shape
    ws32 = ws.astype(jnp.float32)
    bs32 = bs.astype(jnp.float32)
    wt32 = wt.astype(jnp.float32)
    bt32 = bt.astype(jnp.float32)
    w_sum = wt32.T + jnp.tile(ws32.T, (1, L))                 # [D, L*L]
    b_sum = (bt32 + jnp.tile(bs32, (L,))).reshape(1, L * L)   # [1, L*L], keep f32
    return w_sum.astype(param_dtype), b_sum


# ----------------------------------------------------------------------------
# Wrapper
# ----------------------------------------------------------------------------
def _cdiv(a, b):
    return -(-a // b)


def _round_up(a, b):
    return _cdiv(a, b) * b


def _choose_row_tile(M, tm_max):
    """Largest allowed row tile, but keep >= 2 grid steps when possible (v7x)."""
    tm = min(tm_max, _round_up(M, 8))
    if M > 8 and _cdiv(M, tm) < 2:
        tm = max(8, _round_up(_cdiv(M, 2), 8))
    return tm


def chain_crf_apply(x, w_sum, b_sum, mask=None, *, tm_max=1024, out_dtype=None):
    """Hot path: x [B,T,D], pre-fused params -> energy [B,T,L,L]."""
    B, T, D = x.shape
    LL = w_sum.shape[1]
    L = int(round(math.sqrt(LL)))
    assert L * L == LL, "fused weight must have L*L columns"
    out_dtype = x.dtype if out_dtype is None else out_dtype

    M = B * T
    tm = _choose_row_tile(M, tm_max)
    grid = _cdiv(M, tm)
    M_pad = grid * tm

    x_flat = x.reshape(M, D)
    if mask is None:
        mask_flat = jnp.ones((M_pad, 1), jnp.float32)
    else:
        mask_flat = mask.reshape(M, 1).astype(jnp.float32)
        if M_pad != M:
            mask_flat = jnp.pad(mask_flat, ((0, M_pad - M), (0, 0)))
    if M_pad != M:
        x_flat = jnp.pad(x_flat, ((0, M_pad - M), (0, 0)))

    # VMEM at tm=1024 f32: x 2x128KB + out 2x512KB + mask 2x512KB + params ~13KB
    # ~= 2.3 MiB -> fits the default scoped VMEM on every generation (incl. v7x).
    out_flat = pl.pallas_call(
        _chain_crf_energy_kernel,
        out_shape=jax.ShapeDtypeStruct((M_pad, LL), out_dtype),
        grid_spec=pltpu.PrefetchScalarGridSpec(
            num_scalar_prefetch=0,
            grid=(grid,),
            in_specs=[
                pl.BlockSpec((tm, D), lambda i: (i, 0)),    # x tile (streamed)
                pl.BlockSpec((D, LL), lambda i: (0, 0)),    # fused weights (resident)
                pl.BlockSpec((1, LL), lambda i: (0, 0)),    # fused bias (resident)
                pl.BlockSpec((tm, 1), lambda i: (i, 0)),    # mask tile (streamed)
            ],
            out_specs=pl.BlockSpec((tm, LL), lambda i: (i, 0)),
        ),
        compiler_params=pltpu.CompilerParams(
            dimension_semantics=("parallel",)),
    )(x_flat, w_sum, b_sum, mask_flat)

    if M_pad != M:
        out_flat = out_flat[:M]
    return out_flat.reshape(B, T, L, L)


def chain_crf_forward(x, ws, bs, wt, bt, mask=None, *, tm_max=1024, out_dtype=None):
    """Convenience wrapper matching ChainCRF.forward(input, mask) (bigram=True).

    For repeated calls with fixed parameters, call fuse_chain_crf_params once
    (model init / same jit so XLA folds it) and call chain_crf_apply directly.
    """
    w_sum, b_sum = fuse_chain_crf_params(ws, bs, wt, bt, param_dtype=x.dtype)
    return chain_crf_apply(x, w_sum, b_sum, mask=mask,
                           tm_max=tm_max, out_dtype=out_dtype)


# ----------------------------------------------------------------------------
# Pure-JAX reference mirroring the PyTorch forward
# ----------------------------------------------------------------------------
def chain_crf_reference(x, ws, bs, wt, bt, mask=None):
    B, T, _ = x.shape
    L = ws.shape[0]
    out_s = jnp.einsum("btd,ld->btl", x, ws) + bs                        # [B,T,L]
    out_t = (jnp.einsum("btd,kd->btk", x, wt) + bt).reshape(B, T, L, L)  # [B,T,L,L]
    out = out_t + out_s[:, :, None, :]
    if mask is not None:
        out = out * mask[:, :, None, None]
    return out


# ----------------------------------------------------------------------------
# Self-test
# ----------------------------------------------------------------------------
if __name__ == "__main__":
    # Module config: input_size=32, num_labels=4 -> L = num_labels + 1 = 5
    batch, length, input_size, num_labels = 2, 8, 32, 4
    L = num_labels + 1

    key = jax.random.PRNGKey(0)
    kx, kws, kwt, kx2 = jax.random.split(key, 4)

    x = jax.random.normal(kx, (batch, length, input_size), jnp.float32)

    # Parameter init matching shapes from __init__ (bigram=True):
    bound_s = 1.0 / np.sqrt(input_size)
    ws = jax.random.uniform(kws, (L, input_size), jnp.float32, -bound_s, bound_s)
    bs = jnp.zeros((L,), jnp.float32)
    bound_t = np.sqrt(6.0 / (input_size + L * L))
    wt = jax.random.uniform(kwt, (L * L, input_size), jnp.float32, -bound_t, bound_t)
    bt = jnp.zeros((L * L,), jnp.float32)

    # mask: valid lengths [8, 5]
    lengths = jnp.array([8, 5], jnp.int32)
    mask = (jnp.arange(length)[None, :] < lengths[:, None]).astype(jnp.float32)

    # --- Test 1: f32, masked ------------------------------------------------
    out = jax.block_until_ready(chain_crf_forward(x, ws, bs, wt, bt, mask))
    ref = chain_crf_reference(x, ws, bs, wt, bt, mask)
    np.testing.assert_allclose(np.asarray(out), np.asarray(ref),
                               rtol=1e-5, atol=1e-5)
    assert out.shape == (batch, length, L, L)

    # --- Test 2: f32, no mask, B*T not a multiple of the tile (padding path) -
    b2, t2 = 3, 7
    x2 = jax.random.normal(kx2, (b2, t2, input_size), jnp.float32)
    out2 = jax.block_until_ready(chain_crf_forward(x2, ws, bs, wt, bt, None))
    ref2 = chain_crf_reference(x2, ws, bs, wt, bt, None)
    np.testing.assert_allclose(np.asarray(out2), np.asarray(ref2),
                               rtol=1e-5, atol=1e-5)
    assert out2.shape == (b2, t2, L, L)

    # --- Test 3: bf16 activation/output stream (f32 accumulation on MXU) -----
    out_bf16 = jax.block_until_ready(
        chain_crf_forward(x.astype(jnp.bfloat16), ws, bs, wt, bt, mask))
    assert out_bf16.dtype == jnp.bfloat16
    np.testing.assert_allclose(np.asarray(out_bf16, dtype=np.float32),
                               np.asarray(ref), rtol=1e-1, atol=1e-1)

    print("KERNEL_OK")
</pallas_src>

<mosaic_0001>
module attributes {stable_mosaic.version = 11 : i64} {
  func.func @_chain_crf_energy_kernel(%arg0: i32, %arg1: memref<8x32xf32, #tpu.memory_space<vmem>>, %arg2: memref<32x25xf32, #tpu.memory_space<vmem>>, %arg3: memref<1x25xf32, #tpu.memory_space<vmem>>, %arg4: memref<8x1xf32, #tpu.memory_space<vmem>>, %arg5: memref<8x25xf32, #tpu.memory_space<vmem>>) attributes {dimension_semantics = [#tpu.dimension_semantics<parallel>], iteration_bounds = array<i64: 2>, scalar_prefetch = 0 : i64, scratch_operands = 0 : i64, tpu.core_type = #tpu.core_type<tc>, window_params = [{transform_indices = @transform_0, window_bounds = array<i64: 8, 32>}, {pipeline_mode = #tpu.pipeline_mode<synchronous>, transform_indices = @transform_1, window_bounds = array<i64: 32, 25>}, {pipeline_mode = #tpu.pipeline_mode<synchronous>, transform_indices = @transform_2, window_bounds = array<i64: 1, 25>}, {transform_indices = @transform_3, window_bounds = array<i64: 8, 1>}, {transform_indices = @transform_4, window_bounds = array<i64: 8, 25>}]} {
    %c0 = arith.constant 0 : index
    %c0_0 = arith.constant 0 : index
    %0 = vector.load %arg1[%c0, %c0_0] : memref<8x32xf32, #tpu.memory_space<vmem>>, vector<8x32xf32>
    %c0_1 = arith.constant 0 : index
    %c0_2 = arith.constant 0 : index
    %1 = vector.load %arg2[%c0_1, %c0_2] : memref<32x25xf32, #tpu.memory_space<vmem>>, vector<32x25xf32>
    %cst = arith.constant dense<0.000000e+00> : vector<8x25xf32>
    %2 = tpu.matmul %0, %1, %cst {dimension_numbers = #tpu.dot_dimension_numbers<[1], [0], [0], [1], [0, 0, 1, 1], [], []>} : vector<8x32xf32>, vector<32x25xf32>, vector<8x25xf32> -> vector<8x25xf32>
    %c0_3 = arith.constant 0 : index
    %c0_4 = arith.constant 0 : index
    %3 = vector.load %arg3[%c0_3, %c0_4] : memref<1x25xf32, #tpu.memory_space<vmem>>, vector<1x25xf32>
    %4 = vector.broadcast %3 : vector<1x25xf32> to vector<8x25xf32>
    %5 = arith.addf %2, %4 : vector<8x25xf32>
    %c0_5 = arith.constant 0 : index
    %c0_6 = arith.constant 0 : index
    %6 = vector.load %arg4[%c0_5, %c0_6] : memref<8x1xf32, #tpu.memory_space<vmem>>, vector<8x1xf32>
    %7 = vector.broadcast %6 : vector<8x1xf32> to vector<8x25xf32>
    %8 = arith.mulf %5, %7 : vector<8x25xf32>
    %c0_7 = arith.constant 0 : index
    %c0_8 = arith.constant 0 : index
    %9 = vector.load %arg5[%c0_7, %c0_8] : memref<8x25xf32, #tpu.memory_space<vmem>>, vector<8x25xf32>
    tpu.vector_store %arg5[%c0_7, %c0_8], %8 {strides = array<i32>} : memref<8x25xf32, #tpu.memory_space<vmem>>, vector<8x25xf32>,
    return
  }
  func.func @transform_0(%arg0: i32) -> (i32, i32) {
    %c0_i32 = arith.constant 0 : i32
    %c0_i32_0 = arith.constant 0 : i32
    return %arg0, %c0_i32 : i32, i32
  }
  func.func @transform_1(%arg0: i32) -> (i32, i32) {
    %c0_i32 = arith.constant 0 : i32
    %c0_i32_0 = arith.constant 0 : i32
    %c0_i32_1 = arith.constant 0 : i32
    return %c0_i32, %c0_i32_0 : i32, i32
  }
  func.func @transform_2(%arg0: i32) -> (i32, i32) {
    %c0_i32 = arith.constant 0 : i32
    %c0_i32_0 = arith.constant 0 : i32
    %c0_i32_1 = arith.constant 0 : i32
    return %c0_i32, %c0_i32_0 : i32, i32
  }
  func.func @transform_3(%arg0: i32) -> (i32, i32) {
    %c0_i32 = arith.constant 0 : i32
    %c0_i32_0 = arith.constant 0 : i32
    return %arg0, %c0_i32 : i32, i32
  }
  func.func @transform_4(%arg0: i32) -> (i32, i32) {
    %c0_i32 = arith.constant 0 : i32
    %c0_i32_0 = arith.constant 0 : i32
    return %arg0, %c0_i32 : i32, i32
  }
}

</mosaic_0001>

<llo_original>
// kernel: tpu_custom_call.1
$region0: #{tpu_custom_call.1}
  #allocation0 [shape = 'u32[]', space=smem, size = 0x4, offset = 0x4, fixed_abs, tag = 'smem constant byte address 0x4 - core index']
  #allocation1 [shape = 'u32[144,128]{1,0:T(1,128)}', space=vmem, size = 0x12000, scoped, tag = 'internal scratch']
  %s0 = inlined_call_operand.vmem [shape: f32[16,32], index: 0, kind: input, shape index: {}]
  %s1 = inlined_call_operand.hbm [shape: f32[32,25], index: 1, kind: input, shape index: {}]
  %s2 = inlined_call_operand.vmem [shape: f32[1,25], index: 2, kind: input, shape index: {}]
  %s3 = inlined_call_operand.vmem [shape: f32[16,1], index: 3, kind: input, shape index: {}]
  %s4 = inlined_call_operand.hbm [shape: f32[16,25], index: 4, kind: output, shape index: {}]
  %s5 = sld [smem:[#allocation0]]
  $region53: #{tpu_custom_call.1} parent=0
    _
  %s7 = ssub.s32 1, %s5
  %s8 = scalar_select 0, %s7, %s5
  $region1: #{tpu_custom_call.1} parent=0
    #allocation2 [shape = 'u8[16384]{0}', space=vmem, size = 0x4000, scoped, tag = 'input window, operand 1, single buffered']
    #allocation3 [shape = 's32[2]{0}', space=sflag, size = 0x8, scoped, tag = 'scoped memory for tpu_custom_call.1']
    #allocation4 [shape = 's32[2]{0}', space=sflag, size = 0x8, scoped, tag = 'scoped memory for tpu_custom_call.1']
    #allocation5 [shape = 'u8[8192]{0}', space=vmem, size = 0x2000, scoped, tag = 'output window, operand 0']
    %9 = vsyncpa [#allocation3], 0
    %10 = vsyncpa [#allocation4], 0
    %s11 = scalar_lea.sflag [#allocation4], 1
    %12 = vsyncpa %s11, 0
    loop: start=0, step=1, limit=4
    $region2: #{tpu_custom_call.1} parent=1 // loop_pre_header
      _
    $region3: #{tpu_custom_call.1} parent=1 // loop_header
      %s14 = sphi 0, %s18
      %p15 = scmp.ge.s32.totalorder %s14, 4
      %s24 = sphi 0, %s26
      %s27 = sphi 0, %s24
      %s28 = sphi 0, %s27
      %s44 = sphi 0, %s28
      %s48 = sphi 0, %s48
      %s50 = sphi 0, %s48
      %s51 = sphi 0, %s50
      %s65 = sphi 0, %s51
      %s69 = sphi 0, %s69
      %s71 = sphi 0, %s69
      %s72 = sphi 0, %s71
      %s86 = sphi 0, %s72
      %s92 = sphi 0, %s94
      %s95 = sphi 0, %s92
      %s96 = sphi 0, %s95
      %s112 = sphi 0, %s96
      %s118 = sphi 0, %s120
      %s121 = sphi 0, %s118
      %s122 = sphi 0, %s121
      %s138 = sphi 0, %s122
    $region4: #{tpu_custom_call.1} parent=1 // loop_header_branch
      %17 = sbr.rel (%p15) target = $region8
    $region5: #{tpu_custom_call.1} parent=1 // loop_body
      %s19 = ssub.s32 %s14, 1
      %s20 = ssub.s32 %s14, 2
      %s21 = sadd.s32 %s14, 1
      %s22 = ssub.s32 %s14, %s21
      %p23 = scmp.eq.s32.totalorder %s22, 0
      %s25 = sadd.s32 %s24, 1
      %s26 = scalar_select %p23, %s24, %s25
      %p29 = pneg %p23
      %p30 = scmp.eq.s32.totalorder %s14, 1
      %p31 = por %p29, %p30
      %p32 = scmp.ne.s32.totalorder %s24, %s27
      %p33 = scmp.eq.s32.totalorder %s14, 0
      %p34 = por %p32, %p33
      %p35 = scmp.ne.s32.totalorder %s24, %s27
      %p36 = scmp.eq.s32.totalorder %s19, 1
      %p37 = por %p35, %p36
      %p38 = scmp.ne.s32.totalorder %s27, %s28
      %p39 = scmp.eq.s32.totalorder %s19, 0
      %p40 = por %p38, %p39
      %p41 = scmp.ne.s32.totalorder %s27, %s28
      %p42 = scmp.eq.s32.totalorder %s20, 1
      %p43 = por %p41, %p42
      %p45 = scmp.ne.s32.totalorder %s28, %s44
      %p46 = scmp.eq.s32.totalorder %s20, 0
      %p47 = por %p45, %p46
      %s49 = sadd.s32 %s48, 1
      %p52 = scmp.eq.s32.totalorder %s14, 1
      %p53 = scmp.ne.s32.totalorder %s48, %s50
      %p54 = scmp.eq.s32.totalorder %s14, 0
      %p55 = por %p53, %p54
      %p56 = scmp.ne.s32.totalorder %s48, %s50
      %p57 = scmp.eq.s32.totalorder %s19, 1
      %p58 = por %p56, %p57
      %p59 = scmp.ne.s32.totalorder %s50, %s51
      %p60 = scmp.eq.s32.totalorder %s19, 0
      %p61 = por %p59, %p60
      %p62 = scmp.ne.s32.totalorder %s50, %s51
      %p63 = scmp.eq.s32.totalorder %s20, 1
      %p64 = por %p62, %p63
      %p66 = scmp.ne.s32.totalorder %s51, %s65
      %p67 = scmp.eq.s32.totalorder %s20, 0
      %p68 = por %p66, %p67
      %s70 = sadd.s32 %s69, 1
      %p73 = scmp.eq.s32.totalorder %s14, 1
      %p74 = scmp.ne.s32.totalorder %s69, %s71
      %p75 = scmp.eq.s32.totalorder %s14, 0
      %p76 = por %p74, %p75
      %p77 = scmp.ne.s32.totalorder %s69, %s71
      %p78 = scmp.eq.s32.totalorder %s19, 1
      %p79 = por %p77, %p78
      %p80 = scmp.ne.s32.totalorder %s71, %s72
      %p81 = scmp.eq.s32.totalorder %s19, 0
      %p82 = por %p80, %p81
      %p83 = scmp.ne.s32.totalorder %s71, %s72
      %p84 = scmp.eq.s32.totalorder %s20, 1
      %p85 = por %p83, %p84
      %p87 = scmp.ne.s32.totalorder %s72, %s86
      %p88 = scmp.eq.s32.totalorder %s20, 0
      %p89 = por %p87, %p88
      %s90 = ssub.s32 %s14, %s21
      %p91 = scmp.eq.s32.totalorder %s90, 0
      %s93 = sadd.s32 %s92, 1
      %s94 = scalar_select %p91, %s92, %s93
      %p97 = pneg %p91
      %p98 = scmp.eq.s32.totalorder %s14, 1
      %p99 = por %p97, %p98
      %p100 = scmp.ne.s32.totalorder %s92, %s95
      %p101 = scmp.eq.s32.totalorder %s14, 0
      %p102 = por %p100, %p101
      %p103 = scmp.ne.s32.totalorder %s92, %s95
      %p104 = scmp.eq.s32.totalorder %s19, 1
      %p105 = por %p103, %p104
      %p106 = scmp.ne.s32.totalorder %s95, %s96
      %p107 = scmp.eq.s32.totalorder %s19, 0
      %p108 = por %p106, %p107
      %p109 = scmp.ne.s32.totalorder %s95, %s96
      %p110 = scmp.eq.s32.totalorder %s20, 1
      %p111 = por %p109, %p110
      %p113 = scmp.ne.s32.totalorder %s96, %s112
      %p114 = scmp.eq.s32.totalorder %s20, 0
      %p115 = por %p113, %p114
      %s116 = ssub.s32 %s14, %s21
      %p117 = scmp.eq.s32.totalorder %s116, 0
      %s119 = sadd.s32 %s118, 1
      %s120 = scalar_select %p117, %s118, %s119
      %p123 = pneg %p117
      %p124 = scmp.eq.s32.totalorder %s14, 1
      %p125 = por %p123, %p124
      %p126 = scmp.ne.s32.totalorder %s118, %s121
      %p127 = scmp.eq.s32.totalorder %s14, 0
      %p128 = por %p126, %p127
      %p129 = scmp.ne.s32.totalorder %s118, %s121
      %p130 = scmp.eq.s32.totalorder %s19, 1
      %p131 = por %p129, %p130
      %p132 = scmp.ne.s32.totalorder %s121, %s122
      %p133 = scmp.eq.s32.totalorder %s19, 0
      %p134 = por %p132, %p133
      %p135 = scmp.ne.s32.totalorder %s121, %s122
      %p136 = scmp.eq.s32.totalorder %s20, 1
      %p137 = por %p135, %p136
      %p139 = scmp.ne.s32.totalorder %s122, %s138
      %p140 = scmp.eq.s32.totalorder %s20, 0
      %p141 = por %p139, %p140
      %p142 = scmp.le.s32.totalorder 1, %s14
      %p143 = scmp.lt.s32.totalorder %s14, 3
      %p144 = pnand %p142, %p143
      %p145 = pneg %p144
      // Predicated region
      $region9: #{tpu_custom_call.1} parent=5 // pred_check
        _
      $region10: #{tpu_custom_call.1} parent=5 // pred_check_branch
        %147 = sbr.rel (%p144) target = $region12
      $region11: #{tpu_custom_call.1} parent=5 // pred_region
        %s148 = ssub.s32 %s14, 1
        // Predicated region
        $region13: #{tpu_custom_call.1} parent=11 // pred_check
          %p149 = pneg %p61
        $region14: #{tpu_custom_call.1} parent=11 // pred_check_branch
          %151 = sbr.rel (%p149) target = $region16
        $region15: #{tpu_custom_call.1} parent=11 // pred_region
          %s153 = ssub.s32 512, 512
          %154 = vsyncadd [#allocation3], %s153
          %s155 = sshll.u32 [#allocation2], 4
          %s156 = int_to_ptr.vmem [resolvable:$true] %s155
          %161 = dma.hbm_to_vmem [thread:$0]  %s1, 512, %s156, [#allocation3], 128, 128, 8
        $region16: #{tpu_custom_call.1} parent=11 // pred_fallthru
          _
        // Predicated region
        $region17: #{tpu_custom_call.1} parent=11 // pred_check
          %p162 = pneg %p82
        $region18: #{tpu_custom_call.1} parent=11 // pred_check_branch
          %164 = sbr.rel (%p162) target = $region20
        $region19: #{tpu_custom_call.1} parent=11 // pred_region
          _
        $region20: #{tpu_custom_call.1} parent=11 // pred_fallthru
          _
      $region12: #{tpu_custom_call.1} parent=5 // pred_fallthru
        _
      %p165 = scmp.lt.s32.totalorder %s14, 2
      // Predicated region
      $region21: #{tpu_custom_call.1} parent=5 // pred_check
        %p166 = pneg %p165
      $region22: #{tpu_custom_call.1} parent=5 // pred_check_branch
        %168 = sbr.rel (%p166) target = $region24
      $region23: #{tpu_custom_call.1} parent=5 // pred_region
        // Predicated region
        $region25: #{tpu_custom_call.1} parent=23 // pred_check
          %p169 = pneg %p34
        $region26: #{tpu_custom_call.1} parent=23 // pred_check_branch
          %171 = sbr.rel (%p169) target = $region28
        $region27: #{tpu_custom_call.1} parent=23 // pred_region
          %p172 = scmp.lt.s32.totalorder %s14, 1
          %s173 = scalar_select %p172, %s14, 1
          %s174 = smul.addr %s173, 8
          %s175 = scalar_lea.vmem %s0, %s174
        $region28: #{tpu_custom_call.1} parent=23 // pred_fallthru
          _
        // Predicated region
        $region29: #{tpu_custom_call.1} parent=23 // pred_check
          %p176 = pneg %p102
        $region30: #{tpu_custom_call.1} parent=23 // pred_check_branch
          %178 = sbr.rel (%p176) target = $region32
        $region31: #{tpu_custom_call.1} parent=23 // pred_region
          %p179 = scmp.lt.s32.totalorder %s14, 1
          %s180 = scalar_select %p179, %s14, 1
          %s181 = smul.addr %s180, 8
          %s182 = scalar_lea.vmem %s3, %s181
        $region32: #{tpu_custom_call.1} parent=23 // pred_fallthru
          _
      $region24: #{tpu_custom_call.1} parent=5 // pred_fallthru
        _
      %p183 = scmp.le.s32.totalorder 1, %s14
      %p184 = scmp.lt.s32.totalorder %s14, 3
      %p185 = pnand %p183, %p184
      %p186 = pneg %p185
      // Predicated region
      $region33: #{tpu_custom_call.1} parent=5 // pred_check
        _
      $region34: #{tpu_custom_call.1} parent=5 // pred_check_branch
        %188 = sbr.rel (%p185) target = $region36
      $region35: #{tpu_custom_call.1} parent=5 // pred_region
        %s189 = ssub.s32 %s14, 1
        // Predicated region
        $region37: #{tpu_custom_call.1} parent=35 // pred_check
          %p190 = pneg %p61
        $region38: #{tpu_custom_call.1} parent=35 // pred_check_branch
          %192 = sbr.rel (%p190) target = $region40
        $region39: #{tpu_custom_call.1} parent=35 // pred_region
          %193 = dma.done [#allocation3], 512
        $region40: #{tpu_custom_call.1} parent=35 // pred_fallthru
          _
        %p194 = scmp.lt.s32.totalorder %s19, 1
        %s195 = scalar_select %p194, %s19, 1
        %s196 = smul.addr %s195, 8
        %s197 = scalar_lea.vmem %s0, %s196
        %p198 = pneg %p40
        %p199 = pneg %p37
        %p200 = pneg %p61
        %p201 = pneg %p58
        %p202 = pneg %p82
        %p203 = pneg %p79
        %p204 = scmp.lt.s32.totalorder %s19, 1
        %s205 = scalar_select %p204, %s19, 1
        %s206 = smul.addr %s205, 8
        %s207 = scalar_lea.vmem %s3, %s206
        %p208 = pneg %p108
        %p209 = pneg %p105
        %p210 = pneg %p134
        %p211 = pneg %p131
        %s212 = sand.u32 %s121, 1
        %s213 = scalar_lea.sflag [#allocation4], %s212
        %s214 = sand.u32 %s121, 1
        %s215 = smul.addr %s214, 8
        %s216 = scalar_lea.vmem [#allocation5], %s215
        %p217 = scmp.lt.s32.totalorder %s19, 1
        %s218 = scalar_select %p217, %s19, 1
        %s219 = smul.addr %s218, 8
        %s220 = scalar_lea.vmem %s0, %s219
        %p221 = scmp.lt.s32.totalorder %s19, 1
        %s222 = scalar_select %p221, %s19, 1
        %s223 = smul.addr %s222, 8
        %s224 = scalar_lea.vmem %s3, %s223
        %v225 = vld [vmem:[%s220] sm:$0xff]
        %v226 = vld [vmem:[#allocation2] sm:$0xff]
        %v227 = vld [vmem:[#allocation2 + $0x8] sm:$0xff]
        %v228 = vld [vmem:[#allocation2 + $0x10] sm:$0xff]
        %v229 = vld [vmem:[#allocation2 + $0x18] sm:$0xff]
        %v230 = vld [vmem:[%s2] sm:$0x1]
        %v232 = vlaneseq
        %v233 = vshrl.u32 %v232, 7
        %v234 = vsub.s32 0, %v233
        %v235 = vrot.slane %v230, %v234
        %vm237 = vcmask 261120
        %v239 = vsel %vm237, %v225, 0
        %241 = vmatprep.subr.mxu0 0.0
        %242 = vmatpush1.msra.mxu0 %v226
        %243 = vmatprep.subr.mxu0 0.0
        %244 = vmatpush1.msra.mxu0 %v227
        %245 = vmatprep.subr.mxu0 0.0
        %246 = vmatpush1.msra.mxu0 %v228
        %247 = vmatprep.subr.mxu0 0.0
        %248 = vmatpush1.msra.mxu0 %v229
        %249 = vmatprep.subr.mxu0 0.0
        %250 = vmatpush1.msra.mxu0 0.0
        %251 = vmatprep.subr.mxu0 0.0
        %252 = vmatpush1.msra.mxu0 0.0
        %253 = vmatprep.subr.mxu0 0.0
        %254 = vmatpush1.msra.mxu0 0.0
        %255 = vmatprep.subr.mxu0 0.0
        %256 = vmatpush1.msra.mxu0 0.0
        %257 = vmatprep.subr.mxu0 0.0
        %258 = vmatpush1.msra.mxu0 0.0
        %259 = vmatprep.subr.mxu0 0.0
        %260 = vmatpush1.msra.mxu0 0.0
        %261 = vmatprep.subr.mxu0 0.0
        %262 = vmatpush1.msra.mxu0 0.0
        %263 = vmatprep.subr.mxu0 0.0
        %264 = vmatpush1.msra.mxu0 0.0
        %265 = vmatprep.subr.mxu0 0.0
        %266 = vmatpush1.msra.mxu0 0.0
        %267 = vmatprep.subr.mxu0 0.0
        %268 = vmatpush1.msra.mxu0 0.0
        %269 = vmatprep.subr.mxu0 0.0
        %270 = vmatpush1.msra.mxu0 0.0
        %271 = vmatprep.subr.mxu0 0.0
        %272 = vmatpush1.msra.mxu0 0.0
        %273 = vmatprep.subr.mxu0 0.0
        %274 = vmatpush1.msra.mxu0 0.0
        %275 = vmatprep.subr.mxu0 0.0
        %276 = vmatpush1.msra.mxu0 0.0
        %277 = vmatprep.subr.mxu0 0.0
        %278 = vmatpush1.msra.mxu0 0.0
        %279 = vmatprep.subr.mxu0 0.0
        %280 = vmatpush1.msra.mxu0 0.0
        %281 = vmatprep.subr.mxu0 0.0
        %282 = vmatpush1.msra.mxu0 0.0
        %283 = vmatprep.subr.mxu0 0.0
        %284 = vmatpush1.msra.mxu0 0.0
        %285 = vmatprep.subr.mxu0 0.0
        %286 = vmatpush1.msra.mxu0 0.0
        %287 = vmatprep.subr.mxu0 0.0
        %288 = vmatpush1.msra.mxu0 0.0
        %289 = vmatprep.subr.mxu0 0.0
        %290 = vmatpush1.msra.mxu0 0.0
        %291 = vmatprep.subr.mxu0 0.0
        %292 = vmatpush1.msra.mxu0 0.0
        %293 = vmatprep.subr.mxu0 0.0
        %294 = vmatpush1.msra.mxu0 0.0
        %295 = vmatprep.subr.mxu0 0.0
        %296 = vmatpush1.msra.mxu0 0.0
        %297 = vmatprep.subr.mxu0 0.0
        %298 = vmatpush1.msra.mxu0 0.0
        %299 = vmatprep.subr.mxu0 0.0
        %300 = vmatpush1.msra.mxu0 0.0
        %301 = vmatprep.subr.mxu0 0.0
        %302 = vmatpush1.msra.mxu0 0.0
        %303 = vmatprep.subr.mxu0 0.0
        %304 = vmatpush1.msra.mxu0 0.0
        %305 = vmatprep.mubr.f32.mxu0 0.0
        %306 = vmatmul.mubr.f32.gmra.mrb[0].mxu0 %v239
        %v307 = vpop.f32.mrb[0].mxu0
        %v308 = vadd.f32 %v235, %v307
        %v309 = vpop.f32.mrb[0].mxu0
        %310 = vdwg.mxu0
        %v311 = vld [vmem:[%s224] sm:$0xff]
        %313 = vset.pattern.permute.xlu0 0
        %314 = vperm.xlu0 %313, %v311
        %v315 = vpop.permute.xlu0 %314
        %v317 = vmul.f32 %v308, %v315
        %vm318 = vcmask 203776
        %319 = vst.msk [vmem:[%s216] sm:$0xff] %vm318, %v317
        %s320 = sand.u32 %s121, 1
        %s321 = scalar_lea.sflag [#allocation4], %s320
        %s322 = sand.u32 %s121, 1
        %s323 = smul.addr %s322, 8
        %s324 = scalar_lea.vmem [#allocation5], %s323
        // Predicated region
        $region41: #{tpu_custom_call.1} parent=35 // pred_check
          %p325 = pneg %p131
        $region42: #{tpu_custom_call.1} parent=35 // pred_check_branch
          %327 = sbr.rel (%p325) target = $region44
        $region43: #{tpu_custom_call.1} parent=35 // pred_region
          %s329 = ssub.s32 128, 128
          %330 = vsyncadd %s321, %s329
          %s331 = smul.addr %s19, 128
          %s332 = scalar_lea.hbm %s4, %s331
          %s334 = sshll.u32 %s324, 4
          %s335 = int_to_ptr.vmem [resolvable:$true] %s334
          %337 = dma.vmem_to_hbm [thread:$0]  %s335, 128, %s332, %s321
        $region44: #{tpu_custom_call.1} parent=35 // pred_fallthru
          _
      $region36: #{tpu_custom_call.1} parent=5 // pred_fallthru
        _
      %p338 = scmp.le.s32.totalorder 2, %s14
      // Predicated region
      $region45: #{tpu_custom_call.1} parent=5 // pred_check
        %p339 = pneg %p338
      $region46: #{tpu_custom_call.1} parent=5 // pred_check_branch
        %341 = sbr.rel (%p339) target = $region48
      $region47: #{tpu_custom_call.1} parent=5 // pred_region
        %s342 = ssub.s32 %s14, 2
        // Predicated region
        $region49: #{tpu_custom_call.1} parent=47 // pred_check
          %p343 = pneg %p137
        $region50: #{tpu_custom_call.1} parent=47 // pred_check_branch
          %345 = sbr.rel (%p343) target = $region52
        $region51: #{tpu_custom_call.1} parent=47 // pred_region
          %s346 = sand.u32 %s122, 1
          %s347 = scalar_lea.sflag [#allocation4], %s346
          %s348 = sand.u32 %s122, 1
          %s349 = smul.addr %s348, 8
          %s350 = scalar_lea.vmem [#allocation5], %s349
          %351 = dma.done %s347, 128
        $region52: #{tpu_custom_call.1} parent=47 // pred_fallthru
          _
      $region48: #{tpu_custom_call.1} parent=5 // pred_fallthru
        _
    $region6: #{tpu_custom_call.1} parent=1 // loop_footer
      %s18 = sadd.s32 1, %s14
    $region7: #{tpu_custom_call.1} parent=1 // loop_footer_branch
      %13 = sbr.rel target = $region3
    $region8: #{tpu_custom_call.1} parent=1 // loop_exit
      _
    %352 = vsyncpa [#allocation3], 1
    %s353 = scalar_lea.sflag [#allocation3], 1
    %354 = vsyncpa %s353, 1
    %355 = vsyncpa [#allocation4], 1
    %s356 = scalar_lea.sflag [#allocation4], 1
    %357 = vsyncpa %s356, 1

</llo_original>
